<compile_context>
chip_gen: v7x
topology: tpu7x:2x2x1
jax: 0.10.0
libtpu: 0.0.40
codegen_flags: <defaults>
</compile_context>

<pallas_src>
import functools

import jax
import jax.numpy as jnp
from jax.experimental import pallas as pl
from jax.experimental.pallas import tpu as pltpu


# ---------------------------------------------------------------------------
# Pallas kernel
# ---------------------------------------------------------------------------
def _l_color_kernel(x_ref, o_ref, acc_ref, *, inv_hw):
    # x_ref:   (1, C, TILE) f32  — one batch element, all channels, one spatial tile
    # o_ref:   (1, 1, 1, 1) f32  — per-image loss (written on the last tile)
    # acc_ref: (C, 1)       f32  — running per-channel sums (VMEM scratch)
    t = pl.program_id(1)

    @pl.when(t == 0)
    def _init():
        acc_ref[...] = jnp.zeros_like(acc_ref)

    # Per-channel partial sum over this spatial tile (cross-lane reduce, XLU).
    acc_ref[...] += jnp.sum(x_ref[0], axis=1, keepdims=True)

    @pl.when(t == pl.num_programs(1) - 1)
    def _finish():
        # Channel means as (1, 1) slabs (cheap sublane-offset loads).
        mr = acc_ref[0:1, :] * inv_hw
        mg = acc_ref[1:2, :] * inv_hw
        mb = acc_ref[2:3, :] * inv_hw
        drg = (mr - mg) ** 2
        drb = (mr - mb) ** 2
        dgb = (mb - mg) ** 2
        k = jnp.sqrt(drg * drg + drb * drb + dgb * dgb)   # (1, 1)
        o_ref[0, 0] = k.astype(o_ref.dtype)


# ---------------------------------------------------------------------------
# Wrapper
# ---------------------------------------------------------------------------
def _pick_spatial_tile(hw_pad, cap=65536):
    """Largest multiple of 128 that divides hw_pad and is <= cap."""
    t = min(hw_pad, cap)
    t = (t // 128) * 128
    while t > 128 and hw_pad % t != 0:
        t -= 128
    return max(t, 128)


def l_color(x):
    """Zero-DCE color-constancy loss.  x: (B, 3, H, W) -> (B, 1, 1, 1) f32."""
    B, C, H, W = x.shape
    assert C == 3, "L_color expects exactly 3 channels (r, g, b)"
    hw = H * W

    # Flatten spatial onto the lane axis (layout plumbing only, done in XLA).
    x3 = x.reshape(B, C, hw).astype(jnp.float32)

    # Zero-pad the spatial axis to a multiple of 128 only if needed
    # (zeros do not change the channel sums; we divide by the true H*W).
    if hw % 128 != 0:
        hw_pad = ((hw + 127) // 128) * 128
        x3 = jnp.pad(x3, ((0, 0), (0, 0), (0, hw_pad - hw)))
    else:
        hw_pad = hw

    tile = _pick_spatial_tile(hw_pad)
    num_tiles = hw_pad // tile

    kernel = functools.partial(_l_color_kernel, inv_hw=1.0 / float(hw))

    cost = pl.CostEstimate(
        flops=int(B * C * hw_pad + 16 * B),
        transcendentals=int(B),
        bytes_accessed=int(x3.size * 4 + B * 4),
    )

    return pl.pallas_call(
        kernel,
        out_shape=jax.ShapeDtypeStruct((B, 1, 1, 1), jnp.float32),
        grid_spec=pltpu.PrefetchScalarGridSpec(
            num_scalar_prefetch=0,
            grid=(B, num_tiles),
            in_specs=[pl.BlockSpec((1, C, tile), lambda b, t: (b, 0, t))],
            out_specs=pl.BlockSpec((1, 1, 1, 1), lambda b, t: (b, 0, 0, 0)),
            scratch_shapes=[pltpu.VMEM((C, 1), jnp.float32)],
        ),
        compiler_params=pltpu.CompilerParams(
            dimension_semantics=("parallel", "arbitrary")),
        cost_estimate=cost,
    )(x3)


# ---------------------------------------------------------------------------
# Plain-JAX reference (mirrors the PyTorch module exactly)
# ---------------------------------------------------------------------------
def _ref_l_color(x):
    x = x.astype(jnp.float32)
    mean_rgb = jnp.mean(x, axis=(2, 3), keepdims=True)     # (B, 3, 1, 1)
    mr = mean_rgb[:, 0:1]
    mg = mean_rgb[:, 1:2]
    mb = mean_rgb[:, 2:3]
    drg = (mr - mg) ** 2
    drb = (mr - mb) ** 2
    dgb = (mb - mg) ** 2
    return jnp.sqrt(drg ** 2 + drb ** 2 + dgb ** 2)         # (B, 1, 1, 1)


if __name__ == "__main__":
    key = jax.random.PRNGKey(0)
    # Small image-like input consistent with the module: (B, 3, H, W).
    x = jax.random.uniform(key, (2, 3, 16, 16), jnp.float32)

    out = jax.block_until_ready(l_color(x))
    assert out.shape == (2, 1, 1, 1), out.shape

    ref = jax.block_until_ready(_ref_l_color(x))
    assert jnp.allclose(out, ref, rtol=1e-5, atol=1e-6), (
        "mismatch vs reference: %s vs %s" % (out.ravel(), ref.ravel()))

    print("KERNEL_OK")
</pallas_src>

<mosaic_0001>
module attributes {stable_mosaic.version = 11 : i64} {
  func.func @_l_color_kernel(%arg0: i32, %arg1: i32, %arg2: memref<1x3x256xf32, #tpu.memory_space<vmem>>, %arg3: memref<1x1x1x1xf32, #tpu.memory_space<vmem>>, %arg4: memref<3x1xf32, #tpu.memory_space<vmem>>) attributes {dimension_semantics = [#tpu.dimension_semantics<parallel>, #tpu.dimension_semantics<arbitrary>], iteration_bounds = array<i64: 2, 1>, scalar_prefetch = 0 : i64, scratch_operands = 1 : i64, tpu.core_type = #tpu.core_type<tc>, window_params = [{transform_indices = @transform_0, window_bounds = array<i64: 1, 3, 256>}, {transform_indices = @transform_1, window_bounds = array<i64: 1, 1, 1, 1>}]} {
    %c0_i32 = arith.constant 0 : i32
    %0 = arith.cmpi eq, %arg1, %c0_i32 : i32
    %1 = arith.extui %0 : i1 to i32
    %c0_i32_0 = arith.constant 0 : i32
    %2 = arith.cmpi ne, %1, %c0_i32_0 : i32
    scf.if %2 {
      %cst_9 = arith.constant 0.000000e+00 : f32
      %13 = vector.broadcast %cst_9 : f32 to vector<3x1xf32>
      %c0_10 = arith.constant 0 : index
      %c0_11 = arith.constant 0 : index
      %14 = vector.load %arg4[%c0_10, %c0_11] : memref<3x1xf32, #tpu.memory_space<vmem>>, vector<3x1xf32>
      tpu.vector_store %arg4[%c0_10, %c0_11], %13 {strides = array<i32>} : memref<3x1xf32, #tpu.memory_space<vmem>>, vector<3x1xf32>,
    } else {
    }
    %c0 = arith.constant 0 : index
    %c0_1 = arith.constant 0 : index
    %3 = vector.load %arg4[%c0, %c0_1] : memref<3x1xf32, #tpu.memory_space<vmem>>, vector<3x1xf32>
    %c0_2 = arith.constant 0 : index
    %c0_3 = arith.constant 0 : index
    %c0_4 = arith.constant 0 : index
    %4 = vector.load %arg2[%c0_2, %c0_3, %c0_4] : memref<1x3x256xf32, #tpu.memory_space<vmem>>, vector<1x3x256xf32>
    %5 = vector.shape_cast %4 : vector<1x3x256xf32> to vector<3x256xf32>
    %cst = arith.constant dense<0.000000e+00> : vector<3xf32>
    %6 = vector.multi_reduction <add>, %5, %cst [1] : vector<3x256xf32> to vector<3xf32>
    %7 = vector.shape_cast %6 : vector<3xf32> to vector<3x1xf32>
    %8 = arith.addf %3, %7 : vector<3x1xf32>
    %c0_5 = arith.constant 0 : index
    %c0_6 = arith.constant 0 : index
    %9 = vector.load %arg4[%c0_5, %c0_6] : memref<3x1xf32, #tpu.memory_space<vmem>>, vector<3x1xf32>
    tpu.vector_store %arg4[%c0_5, %c0_6], %8 {strides = array<i32>} : memref<3x1xf32, #tpu.memory_space<vmem>>, vector<3x1xf32>,
    %c0_i32_7 = arith.constant 0 : i32
    %10 = arith.cmpi eq, %arg1, %c0_i32_7 : i32
    %11 = arith.extui %10 : i1 to i32
    %c0_i32_8 = arith.constant 0 : i32
    %12 = arith.cmpi ne, %11, %c0_i32_8 : i32
    scf.if %12 {
      %c0_9 = arith.constant 0 : index
      %c0_10 = arith.constant 0 : index
      %13 = vector.load %arg4[%c0_9, %c0_10] : memref<3x1xf32, #tpu.memory_space<vmem>>, vector<1x1xf32>
      %cst_11 = arith.constant 3.906250e-03 : f32
      %14 = vector.broadcast %cst_11 : f32 to vector<1x1xf32>
      %15 = arith.mulf %13, %14 : vector<1x1xf32>
      %c1 = arith.constant 1 : index
      %c0_12 = arith.constant 0 : index
      %16 = vector.load %arg4[%c1, %c0_12] : memref<3x1xf32, #tpu.memory_space<vmem>>, vector<1x1xf32>
      %cst_13 = arith.constant 3.906250e-03 : f32
      %17 = vector.broadcast %cst_13 : f32 to vector<1x1xf32>
      %18 = arith.mulf %16, %17 : vector<1x1xf32>
      %c2 = arith.constant 2 : index
      %c0_14 = arith.constant 0 : index
      %19 = vector.load %arg4[%c2, %c0_14] : memref<3x1xf32, #tpu.memory_space<vmem>>, vector<1x1xf32>
      %cst_15 = arith.constant 3.906250e-03 : f32
      %20 = vector.broadcast %cst_15 : f32 to vector<1x1xf32>
      %21 = arith.mulf %19, %20 : vector<1x1xf32>
      %22 = arith.subf %15, %18 : vector<1x1xf32>
      %23 = arith.mulf %22, %22 : vector<1x1xf32>
      %24 = arith.subf %15, %21 : vector<1x1xf32>
      %25 = arith.mulf %24, %24 : vector<1x1xf32>
      %26 = arith.subf %21, %18 : vector<1x1xf32>
      %27 = arith.mulf %26, %26 : vector<1x1xf32>
      %28 = arith.mulf %23, %23 : vector<1x1xf32>
      %29 = arith.mulf %25, %25 : vector<1x1xf32>
      %30 = arith.addf %28, %29 : vector<1x1xf32>
      %31 = arith.mulf %27, %27 : vector<1x1xf32>
      %32 = arith.addf %30, %31 : vector<1x1xf32>
      %33 = math.sqrt %32 : vector<1x1xf32>
      %c0_16 = arith.constant 0 : index
      %c0_17 = arith.constant 0 : index
      %c0_18 = arith.constant 0 : index
      %c0_19 = arith.constant 0 : index
      %34 = vector.load %arg3[%c0_16, %c0_17, %c0_18, %c0_19] : memref<1x1x1x1xf32, #tpu.memory_space<vmem>>, vector<1x1x1x1xf32>
      %35 = vector.shape_cast %34 : vector<1x1x1x1xf32> to vector<1x1xf32>
      %36 = vector.shape_cast %33 : vector<1x1xf32> to vector<1x1x1x1xf32>
      tpu.vector_store %arg3[%c0_16, %c0_17, %c0_18, %c0_19], %36 {strides = array<i32>} : memref<1x1x1x1xf32, #tpu.memory_space<vmem>>, vector<1x1x1x1xf32>,
    } else {
    }
    return
  }
  func.func @transform_0(%arg0: i32, %arg1: i32) -> (i32, i32, i32) {
    %c0_i32 = arith.constant 0 : i32
    %c0_i32_0 = arith.constant 0 : i32
    return %arg0, %c0_i32, %arg1 : i32, i32, i32
  }
  func.func @transform_1(%arg0: i32, %arg1: i32) -> (i32, i32, i32, i32) {
    %c0_i32 = arith.constant 0 : i32
    %c0_i32_0 = arith.constant 0 : i32
    %c0_i32_1 = arith.constant 0 : i32
    %c0_i32_2 = arith.constant 0 : i32
    return %arg0, %c0_i32, %c0_i32_0, %c0_i32_1 : i32, i32, i32, i32
  }
}

</mosaic_0001>

<llo_original>
// kernel: tpu_custom_call.1
$region0: #{tpu_custom_call.1}
  #allocation0 [shape = 'u32[]', space=smem, size = 0x4, offset = 0x4, fixed_abs, tag = 'smem constant byte address 0x4 - core index']
  #allocation1 [shape = 'u32[144,128]{1,0:T(1,128)}', space=vmem, size = 0x12000, scoped, tag = 'internal scratch']
  #allocation2 [shape = 'f32[3,1]{1,0:T(4,128)}', space=vmem, size = 0x800, scoped, tag = 'scratch operand']
  %s0 = inlined_call_operand.vmem [shape: f32[2,3,256], index: 0, kind: input, shape index: {}]
  %s1 = inlined_call_operand.vmem [shape: f32[2,1,1,1], index: 1, kind: output, shape index: {}]
  %s2 = sld [smem:[#allocation0]]
  $region45: #{tpu_custom_call.1} parent=0
    _
  %s4 = ssub.s32 1, %s2
  %s5 = scalar_select 0, %s4, %s2
  loop: start=0, step=1, limit=4
  $region2: #{tpu_custom_call.1} parent=0 // loop_pre_header
    _
  $region3: #{tpu_custom_call.1} parent=0 // loop_header
    %s7 = sphi 0, %s11
    %p8 = scmp.ge.s32.totalorder %s7, 4
    %s14 = sphi 0, %s26
    %s15 = sphi 0, %s22
    %s16 = sphi 0, %s14
    %s17 = sphi 0, %s15
    %s18 = sphi 0, %s16
    %s19 = sphi 0, %s17
    %s31 = sphi 0, %s33
    %s34 = sphi 0, %s31
    %s35 = sphi 0, %s34
    %s51 = sphi 0, %s35
    %s57 = sphi 0, %s59
    %s60 = sphi 0, %s57
    %s61 = sphi 0, %s60
    %s77 = sphi 0, %s61
  $region4: #{tpu_custom_call.1} parent=0 // loop_header_branch
    %10 = sbr.rel (%p8) target = $region8
  $region5: #{tpu_custom_call.1} parent=0 // loop_body
    %s12 = ssub.s32 %s7, 1
    %s13 = ssub.s32 %s7, 2
    %s20 = sadd.s32 1, %s15
    %p21 = scmp.ge.s32.totalorder %s20, 1
    %s22 = scalar_select %p21, 0, %s20
    %s23 = sadd.s32 1, %s14
    %s24 = scalar_select %p21, %s23, %s14
    %p25 = scmp.ge.s32.totalorder %s24, 2
    %s26 = scalar_select %p25, 0, %s24
    %s27 = ssub.s32 %s14, %s26
    %s28 = ssub.s32 %s15, %s22
    %s29 = sor.u32 %s27, %s28
    %p30 = scmp.eq.s32.totalorder %s29, 0
    %s32 = sadd.s32 %s31, 1
    %s33 = scalar_select %p30, %s31, %s32
    %p36 = pneg %p30
    %p37 = scmp.eq.s32.totalorder %s7, 1
    %p38 = por %p36, %p37
    %p39 = scmp.ne.s32.totalorder %s31, %s34
    %p40 = scmp.eq.s32.totalorder %s7, 0
    %p41 = por %p39, %p40
    %p42 = scmp.ne.s32.totalorder %s31, %s34
    %p43 = scmp.eq.s32.totalorder %s12, 1
    %p44 = por %p42, %p43
    %p45 = scmp.ne.s32.totalorder %s34, %s35
    %p46 = scmp.eq.s32.totalorder %s12, 0
    %p47 = por %p45, %p46
    %p48 = scmp.ne.s32.totalorder %s34, %s35
    %p49 = scmp.eq.s32.totalorder %s13, 1
    %p50 = por %p48, %p49
    %p52 = scmp.ne.s32.totalorder %s35, %s51
    %p53 = scmp.eq.s32.totalorder %s13, 0
    %p54 = por %p52, %p53
    %s55 = ssub.s32 %s14, %s26
    %p56 = scmp.eq.s32.totalorder %s55, 0
    %s58 = sadd.s32 %s57, 1
    %s59 = scalar_select %p56, %s57, %s58
    %p62 = pneg %p56
    %p63 = scmp.eq.s32.totalorder %s7, 1
    %p64 = por %p62, %p63
    %p65 = scmp.ne.s32.totalorder %s57, %s60
    %p66 = scmp.eq.s32.totalorder %s7, 0
    %p67 = por %p65, %p66
    %p68 = scmp.ne.s32.totalorder %s57, %s60
    %p69 = scmp.eq.s32.totalorder %s12, 1
    %p70 = por %p68, %p69
    %p71 = scmp.ne.s32.totalorder %s60, %s61
    %p72 = scmp.eq.s32.totalorder %s12, 0
    %p73 = por %p71, %p72
    %p74 = scmp.ne.s32.totalorder %s60, %s61
    %p75 = scmp.eq.s32.totalorder %s13, 1
    %p76 = por %p74, %p75
    %p78 = scmp.ne.s32.totalorder %s61, %s77
    %p79 = scmp.eq.s32.totalorder %s13, 0
    %p80 = por %p78, %p79
    %p81 = scmp.le.s32.totalorder 1, %s7
    %p82 = scmp.lt.s32.totalorder %s7, 3
    %p83 = pnand %p81, %p82
    %p84 = pneg %p83
    // Predicated region
    $region9: #{tpu_custom_call.1} parent=5 // pred_check
      _
    $region10: #{tpu_custom_call.1} parent=5 // pred_check_branch
      %86 = sbr.rel (%p83) target = $region12
    $region11: #{tpu_custom_call.1} parent=5 // pred_region
      %s87 = ssub.s32 %s7, 1
    $region12: #{tpu_custom_call.1} parent=5 // pred_fallthru
      _
    %p88 = scmp.lt.s32.totalorder %s7, 2
    // Predicated region
    $region13: #{tpu_custom_call.1} parent=5 // pred_check
      %p89 = pneg %p88
    $region14: #{tpu_custom_call.1} parent=5 // pred_check_branch
      %91 = sbr.rel (%p89) target = $region16
    $region15: #{tpu_custom_call.1} parent=5 // pred_region
      // Predicated region
      $region17: #{tpu_custom_call.1} parent=15 // pred_check
        %p92 = pneg %p41
      $region18: #{tpu_custom_call.1} parent=15 // pred_check_branch
        %94 = sbr.rel (%p92) target = $region20
      $region19: #{tpu_custom_call.1} parent=15 // pred_region
        %s95 = smul.u32 2, %s15
        %p96 = scmp.lt.s32.totalorder %s14, 1
        %s97 = scalar_select %p96, %s14, 1
        %p98 = scmp.lt.s32.totalorder %s95, 1
        %s99 = scalar_select %p98, %s95, 1
        %s100 = smul.addr %s97, 2
        %s101 = sadd.s32 %s99, %s100
        %s102 = smul.addr %s101, 4
        %s103 = scalar_lea.vmem %s0, %s102
        %s104 = smul.u32 2, %s15
      $region20: #{tpu_custom_call.1} parent=15 // pred_fallthru
        _
    $region16: #{tpu_custom_call.1} parent=5 // pred_fallthru
      _
    %p105 = scmp.le.s32.totalorder 1, %s7
    %p106 = scmp.lt.s32.totalorder %s7, 3
    %p107 = pnand %p105, %p106
    %p108 = pneg %p107
    // Predicated region
    $region21: #{tpu_custom_call.1} parent=5 // pred_check
      _
    $region22: #{tpu_custom_call.1} parent=5 // pred_check_branch
      %110 = sbr.rel (%p107) target = $region24
    $region23: #{tpu_custom_call.1} parent=5 // pred_region
      %s111 = ssub.s32 %s7, 1
      %s112 = smul.u32 2, %s17
      %p113 = scmp.lt.s32.totalorder %s16, 1
      %s114 = scalar_select %p113, %s16, 1
      %p115 = scmp.lt.s32.totalorder %s112, 1
      %s116 = scalar_select %p115, %s112, 1
      %s117 = smul.addr %s114, 2
      %s118 = sadd.s32 %s116, %s117
      %s119 = smul.addr %s118, 4
      %s120 = scalar_lea.vmem %s0, %s119
      %p121 = pneg %p47
      %p122 = pneg %p44
      %p123 = pneg %p73
      %p124 = pneg %p70
      %p125 = scmp.lt.s32.totalorder %s16, 1
      %s126 = scalar_select %p125, %s16, 1
      %s127 = scalar_lea.vmem %s1, %s126
      %s128 = smul.u32 2, %s17
      %p129 = scmp.lt.s32.totalorder %s16, 1
      %s130 = scalar_select %p129, %s16, 1
      %p131 = scmp.lt.s32.totalorder %s128, 1
      %s132 = scalar_select %p131, %s128, 1
      %s133 = smul.addr %s130, 2
      %s134 = sadd.s32 %s132, %s133
      %s135 = smul.addr %s134, 4
      %s136 = scalar_lea.vmem %s0, %s135
      %s137 = smul.u32 2, %s17
      %p138 = scmp.lt.s32.totalorder %s16, 1
      %s139 = scalar_select %p138, %s16, 1
      %s140 = scalar_lea.vmem %s1, %s139
      %p141 = scmp.eq.s32.totalorder %s17, 0
      // Predicated region
      $region25: #{tpu_custom_call.1} parent=23 // pred_check
        %p142 = pneg %p141
      $region26: #{tpu_custom_call.1} parent=23 // pred_check_branch
        %144 = sbr.rel (%p142) target = $region28
      $region27: #{tpu_custom_call.1} parent=23 // pred_region
        %vm145 = vcmask 2048
        %146 = vst.msk [vmem:[#allocation2] sm:$0x7] %vm145, 0.0
      $region28: #{tpu_custom_call.1} parent=23 // pred_fallthru
        _
      %v147 = vld [vmem:[#allocation2] sm:$0x7]
      %v148 = vld [vmem:[%s136] sm:$0x77]
      %v150 = vcombine.high %v148, %v148
      %vm152 = vcmask 1042432
      %v153 = vsel %vm152, %v148, 0.0
      %v154 = vsel %vm152, %v150, 0.0
      %v155 = vadd.f32 %v153, %v154
      %156 = vadd.xlane.f32.xlu0 %v155
      %v157 = vpop.xlane.xlu0 %156
      %v158 = vadd.f32 %v147, %v157
      %vm159 = vcmask 2048
      %160 = vst.msk [vmem:[#allocation2] sm:$0x7] %vm159, %v158
      // Predicated region
      $region29: #{tpu_custom_call.1} parent=23 // pred_check
        %p161 = pneg %p141
      $region30: #{tpu_custom_call.1} parent=23 // pred_check_branch
        %163 = sbr.rel (%p161) target = $region32
      $region31: #{tpu_custom_call.1} parent=23 // pred_region
        %v164 = vld [vmem:[#allocation2] sm:$0x1]
        %v165 = vmul.f32 %v164, 0.00390625
        %v166 = vld [vmem:[#allocation2 + $0x1] sm:$0x1]
        %v167 = vmul.f32 %v166, 0.00390625
        %v168 = vld [vmem:[#allocation2 + $0x2] sm:$0x1]
        %v169 = vmul.f32 %v168, 0.00390625
        %v170 = vsub.f32 %v165, %v167
        %v171 = vmul.f32 %v170, %v170
        %v172 = vsub.f32 %v165, %v169
        %v173 = vmul.f32 %v172, %v172
        %v174 = vsub.f32 %v169, %v167
        %v175 = vmul.f32 %v174, %v174
        %v176 = vmul.f32 %v171, %v171
        %v177 = vmul.f32 %v173, %v173
        %v178 = vadd.f32 %v176, %v177
        %v179 = vmul.f32 %v175, %v175
        %v180 = vadd.f32 %v178, %v179
        %v181 = vrsqrt.pop %v180
        %v182 = vmul.f32 %v180, %v181
        %vm183 = vcmp.eq.f32.partialorder %v180, inf
        %v184 = vsel %vm183, %v180, %v182
        %vm185 = vcmp.eq.f32.partialorder %v180, 0.0
        %v186 = vand.u32 %v180, 2147483648
        %v187 = vsel %vm185, %v186, %v184
        %vm188 = vcmask 0
        %189 = vst.msk [vmem:[%s140] sm:$0x1] %vm188, %v187
      $region32: #{tpu_custom_call.1} parent=23 // pred_fallthru
        _
      %p190 = scmp.lt.s32.totalorder %s16, 1
      %s191 = scalar_select %p190, %s16, 1
      %s192 = scalar_lea.vmem %s1, %s191
      // Predicated region
      $region33: #{tpu_custom_call.1} parent=23 // pred_check
        %p193 = pneg %p70
      $region34: #{tpu_custom_call.1} parent=23 // pred_check_branch
        %195 = sbr.rel (%p193) target = $region36
      $region35: #{tpu_custom_call.1} parent=23 // pred_region
        _
      $region36: #{tpu_custom_call.1} parent=23 // pred_fallthru
        _
    $region24: #{tpu_custom_call.1} parent=5 // pred_fallthru
      _
    %p196 = scmp.le.s32.totalorder 2, %s7
    // Predicated region
    $region37: #{tpu_custom_call.1} parent=5 // pred_check
      %p197 = pneg %p196
    $region38: #{tpu_custom_call.1} parent=5 // pred_check_branch
      %199 = sbr.rel (%p197) target = $region40
    $region39: #{tpu_custom_call.1} parent=5 // pred_region
      %s200 = ssub.s32 %s7, 2
      // Predicated region
      $region41: #{tpu_custom_call.1} parent=39 // pred_check
        %p201 = pneg %p76
      $region42: #{tpu_custom_call.1} parent=39 // pred_check_branch
        %203 = sbr.rel (%p201) target = $region44
      $region43: #{tpu_custom_call.1} parent=39 // pred_region
        %p204 = scmp.lt.s32.totalorder %s18, 1
        %s205 = scalar_select %p204, %s18, 1
        %s206 = scalar_lea.vmem %s1, %s205
      $region44: #{tpu_custom_call.1} parent=39 // pred_fallthru
        _
    $region40: #{tpu_custom_call.1} parent=5 // pred_fallthru
      _
  $region6: #{tpu_custom_call.1} parent=0 // loop_footer
    %s11 = sadd.s32 1, %s7
  $region7: #{tpu_custom_call.1} parent=0 // loop_footer_branch
    %6 = sbr.rel target = $region3
  $region8: #{tpu_custom_call.1} parent=0 // loop_exit
    _

</llo_original>
